<compile_context>
chip_gen: v7x
topology: tpu7x:2x2x1
jax: 0.10.0
libtpu: 0.0.40
codegen_flags: <defaults>
</compile_context>

<pallas_src>
import jax
import jax.numpy as jnp
from jax.experimental import pallas as pl
from jax.experimental.pallas import tpu as pltpu


# ----------------------------------------------------------------------------
# Kernel body
# ----------------------------------------------------------------------------
def _preprocess_kernel(x_ref, o_ref):
    # Elementwise x * 2 - 1 ([0,1] -> [-1,1]).  Python-int constants are
    # weakly typed: f32/bf16 stay in dtype, integer inputs stay integer.
    o_ref[...] = x_ref[...] * 2 - 1


# ----------------------------------------------------------------------------
# Tiling constants
# ----------------------------------------------------------------------------
_LANE_CANDIDATES = (4096, 2048, 1024, 512, 256, 128)
_TARGET_BLOCK_BYTES = 6 * 1024 * 1024     # ~6 MiB blocks: per-step overhead <10% even on v7x
_VMEM_LIMIT_BYTES = 40 * 1024 * 1024      # 2 arrays x 2 bufs x 6 MiB = 24 MiB + headroom (< 64 MiB v7x)
_MEGACORE_MIN_BYTES = 1 * 1024 * 1024     # split slabs above this into >= 2 blocks (v7x has 2 TCs)
_MAX_SINGLE_BLOCK_BYTES = 4 * 1024 * 1024 # ragged fallback: single full-extent block below this


def _sublane_multiple(dtype) -> int:
    # sub-32-bit dtypes pack along sublanes: 8 rows for 32-bit, 16 for 16-bit,
    # 32 for 8-bit.
    return {4: 8, 2: 16, 1: 32}.get(jnp.dtype(dtype).itemsize, 8)


def _choose_layout(n: int, sub: int):
    """Widest lane width (multiple of 128) that evenly divides n and gives at
    least one packed sublane group of rows.  rows need NOT be a multiple of
    `sub`; the cdiv grid + Pallas boundary masking handles a ragged final
    row-block, so this zero-copy fast path covers essentially all shapes."""
    for w in _LANE_CANDIDATES:
        if n % w == 0 and n // w >= sub:
            return n // w, w
    return None


# ----------------------------------------------------------------------------
# pallas_call wrappers
# ----------------------------------------------------------------------------
def _preprocess_2d(x2d: jax.Array, tile_rows: int, donate: bool = False) -> jax.Array:
    """Elementwise preprocess over a (R, W) lane-dense slab, tiled along rows."""
    R, W = x2d.shape
    grid = (pl.cdiv(R, tile_rows),)
    extra = {}
    if donate:
        # in-place in HBM (only safe if the caller never reuses the raw input)
        extra["input_output_aliases"] = {0: 0}
    return pl.pallas_call(
        _preprocess_kernel,
        out_shape=jax.ShapeDtypeStruct((R, W), x2d.dtype),
        grid_spec=pltpu.PrefetchScalarGridSpec(
            num_scalar_prefetch=0,
            grid=grid,
            in_specs=[pl.BlockSpec((tile_rows, W), lambda i: (i, 0))],
            out_specs=pl.BlockSpec((tile_rows, W), lambda i: (i, 0)),
        ),
        compiler_params=pltpu.CompilerParams(
            dimension_semantics=("parallel",),
            vmem_limit_bytes=_VMEM_LIMIT_BYTES,
        ),
        **extra,
    )(x2d)


def _preprocess_1d(flat: jax.Array) -> jax.Array:
    """Ragged fallback: a single Pallas pass over the flat view (no pad/strip,
    so exactly one read + one write of HBM)."""
    (n,) = flat.shape
    itemsize = jnp.dtype(flat.dtype).itemsize
    if n * itemsize <= _MAX_SINGLE_BLOCK_BYTES:
        # Single full-extent block: always layout-legal regardless of alignment.
        return pl.pallas_call(
            _preprocess_kernel,
            out_shape=jax.ShapeDtypeStruct((n,), flat.dtype),
        )(flat)
    # Large ragged tensors: 1-D tiled grid; the final partial block is masked.
    block = max(1024, (_TARGET_BLOCK_BYTES // itemsize) // 1024 * 1024)
    return pl.pallas_call(
        _preprocess_kernel,
        out_shape=jax.ShapeDtypeStruct((n,), flat.dtype),
        grid_spec=pltpu.PrefetchScalarGridSpec(
            num_scalar_prefetch=0,
            grid=(pl.cdiv(n, block),),
            in_specs=[pl.BlockSpec((block,), lambda i: (i,))],
            out_specs=pl.BlockSpec((block,), lambda i: (i,)),
        ),
        compiler_params=pltpu.CompilerParams(
            dimension_semantics=("parallel",),
            vmem_limit_bytes=_VMEM_LIMIT_BYTES,
        ),
    )(flat)


# ----------------------------------------------------------------------------
# Public preprocess (Pallas-backed `lambda x: x * 2 - 1`)
# ----------------------------------------------------------------------------
def preprocess(imgs: jax.Array, donate: bool = False) -> jax.Array:
    """Pallas-backed equivalent of `x * 2 - 1` for NCHW images (any shape).

    donate=True aliases the output onto the input HBM buffer
    (input_output_aliases={0: 0}) -- only pass it when the caller is certain
    `imgs` is dead afterwards, otherwise the original data is clobbered.
    """
    shape, dtype, n = imgs.shape, imgs.dtype, imgs.size
    sub = _sublane_multiple(dtype)
    itemsize = jnp.dtype(dtype).itemsize

    layout = _choose_layout(n, sub)
    if layout is None:
        # Ragged sizes (n not a multiple of 128, or too few rows): single
        # flat-view pass, no extra HBM round trips.
        return _preprocess_1d(imgs.reshape(-1)).reshape(shape)

    rows, lanes = layout
    x2d = imgs.reshape(rows, lanes)  # zero-copy bitcast reshape

    # ~6 MiB blocks, rounded down to the sublane packing multiple.
    target_rows = max(sub, (_TARGET_BLOCK_BYTES // (lanes * itemsize)) // sub * sub)
    tile_rows = min(rows, target_rows)

    # Megacore: guarantee >= 2 grid steps for slabs > ~1 MiB so both v7x
    # TensorCores get work; a harmless extra grid step on v5e/v6e.
    slab_bytes = rows * lanes * itemsize
    if tile_rows >= rows and slab_bytes > _MEGACORE_MIN_BYTES:
        tile_rows = max(sub, (rows // 2) // sub * sub)

    y2d = _preprocess_2d(x2d, tile_rows, donate=donate)
    return y2d.reshape(shape)


# ----------------------------------------------------------------------------
# Module
# ----------------------------------------------------------------------------
class Embedder:
    """
    JAX/Pallas port of videoseal's abstract `Embedder` base class.

    In a concrete subclass the `x * 2 - 1` preprocess should ideally be fused
    into (or folded into the weights of) the first layer of the watermarking
    network so this standalone 2N-byte HBM pass disappears entirely; it is
    kept as an independent Pallas kernel here because the base class exposes
    it as a standalone callable.
    """

    def __init__(self) -> None:
        self.preprocess = preprocess  # x * 2 - 1 (Pallas kernel)
        self.yuv = False

    def get_random_msg(self, bsz: int = 1, nb_repetitions: int = 1):
        # TODO(synk): abstract in the reference module; returns None.
        return None

    def get_last_layer(self):
        # TODO(synk): abstract in the reference module; returns None.
        return None

    def forward(self, imgs, msgs):
        # TODO(synk): abstract forward has no compute to translate; concrete
        # subclasses implement the watermarking network.  Base class -> None.
        return None

    def __call__(self, imgs, msgs):
        return self.forward(imgs, msgs)


if __name__ == "__main__":
    key = jax.random.PRNGKey(0)
    k_img, k_msg, k_bf16, k_big, k_rag = jax.random.split(key, 5)

    embedder = Embedder()

    # small shapes consistent with the module's BxCxHxW / BxL conventions
    imgs = jax.random.uniform(k_img, (2, 4, 16, 16), dtype=jnp.float32)
    msgs = (jax.random.uniform(k_msg, (2, 8)) > 0.5).astype(jnp.int32)

    # f32 fast path (zero-copy lane-dense slab, single block)
    pre = jax.block_until_ready(embedder.preprocess(imgs))
    ref = imgs * 2.0 - 1.0
    assert pre.shape == imgs.shape and pre.dtype == imgs.dtype
    assert jnp.allclose(pre, ref, atol=1e-6, rtol=1e-6)

    # bf16 path (16-row sublane multiple, lanes=128)
    imgs_bf16 = jax.random.uniform(k_bf16, (1, 3, 32, 32)).astype(jnp.bfloat16)
    pre_bf16 = jax.block_until_ready(embedder.preprocess(imgs_bf16))
    ref_bf16 = imgs_bf16 * 2.0 - 1.0
    assert pre_bf16.shape == imgs_bf16.shape and pre_bf16.dtype == jnp.bfloat16
    assert jnp.allclose(
        pre_bf16.astype(jnp.float32), ref_bf16.astype(jnp.float32),
        atol=1e-2, rtol=1e-2,
    )

    # mid-size f32 (>1 MiB slab): exercises the megacore split (>=2 grid steps)
    # and a ragged final row-block handled by boundary masking.
    imgs_big = jax.random.uniform(k_big, (2, 3, 256, 256), dtype=jnp.float32)
    pre_big = jax.block_until_ready(embedder.preprocess(imgs_big))
    assert jnp.allclose(pre_big, imgs_big * 2.0 - 1.0, atol=1e-6, rtol=1e-6)

    # ragged size (n not a multiple of 128): single flat-view Pallas pass
    imgs_rag = jax.random.uniform(k_rag, (1, 3, 5, 7), dtype=jnp.float32)
    pre_rag = jax.block_until_ready(embedder.preprocess(imgs_rag))
    assert pre_rag.shape == imgs_rag.shape
    assert jnp.allclose(pre_rag, imgs_rag * 2.0 - 1.0, atol=1e-6, rtol=1e-6)

    # abstract forward: returns None, matching the PyTorch base class
    out = embedder(imgs, msgs)
    assert out is None

    print("KERNEL_OK")
</pallas_src>

<mosaic_0001>
module attributes {stable_mosaic.version = 11 : i64} {
  func.func @_preprocess_kernel(%arg0: i32, %arg1: memref<8x256xf32, #tpu.memory_space<vmem>>, %arg2: memref<8x256xf32, #tpu.memory_space<vmem>>) attributes {dimension_semantics = [#tpu.dimension_semantics<parallel>], iteration_bounds = array<i64: 1>, scalar_prefetch = 0 : i64, scratch_operands = 0 : i64, tpu.core_type = #tpu.core_type<tc>, window_params = [{transform_indices = @transform_0, window_bounds = array<i64: 8, 256>}, {transform_indices = @transform_1, window_bounds = array<i64: 8, 256>}]} {
    %c0 = arith.constant 0 : index
    %c0_0 = arith.constant 0 : index
    %0 = vector.load %arg1[%c0, %c0_0] : memref<8x256xf32, #tpu.memory_space<vmem>>, vector<8x256xf32>
    %cst = arith.constant 2.000000e+00 : f32
    %1 = vector.broadcast %cst : f32 to vector<8x256xf32>
    %2 = arith.mulf %0, %1 : vector<8x256xf32>
    %cst_1 = arith.constant 1.000000e+00 : f32
    %3 = vector.broadcast %cst_1 : f32 to vector<8x256xf32>
    %4 = arith.subf %2, %3 : vector<8x256xf32>
    %c0_2 = arith.constant 0 : index
    %c0_3 = arith.constant 0 : index
    %5 = vector.load %arg2[%c0_2, %c0_3] : memref<8x256xf32, #tpu.memory_space<vmem>>, vector<8x256xf32>
    tpu.vector_store %arg2[%c0_2, %c0_3], %4 {strides = array<i32>} : memref<8x256xf32, #tpu.memory_space<vmem>>, vector<8x256xf32>,
    return
  }
  func.func @transform_0(%arg0: i32) -> (i32, i32) {
    %c0_i32 = arith.constant 0 : i32
    %c0_i32_0 = arith.constant 0 : i32
    return %arg0, %c0_i32 : i32, i32
  }
  func.func @transform_1(%arg0: i32) -> (i32, i32) {
    %c0_i32 = arith.constant 0 : i32
    %c0_i32_0 = arith.constant 0 : i32
    return %arg0, %c0_i32 : i32, i32
  }
}

</mosaic_0001>

<llo_original>
// kernel: tpu_custom_call.1
$region0: #{tpu_custom_call.1}
  #allocation0 [shape = 'u32[]', space=smem, size = 0x4, offset = 0x4, fixed_abs, tag = 'smem constant byte address 0x4 - core index']
  #allocation1 [shape = 'u32[144,128]{1,0:T(1,128)}', space=vmem, size = 0x12000, scoped, tag = 'internal scratch']
  %s0 = inlined_call_operand.hbm [shape: f32[8,256], index: 0, kind: input, shape index: {}]
  %s1 = inlined_call_operand.hbm [shape: f32[8,256], index: 1, kind: output, shape index: {}]
  %s2 = sld [smem:[#allocation0]]
  $region18: #{tpu_custom_call.1} parent=0
    _
  %s4 = ssub.s32 1, %s2
  %s5 = scalar_select 0, %s4, %s2
  $region1: #{tpu_custom_call.1} parent=0
    #allocation2 [shape = 'u8[8192]{0}', space=vmem, size = 0x2000, scoped, tag = 'input window, operand 0, single buffered']
    #allocation3 [shape = 's32[1]{0}', space=sflag, size = 0x4, scoped, tag = 'scoped memory for tpu_custom_call.1']
    #allocation4 [shape = 's32[1]{0}', space=sflag, size = 0x4, scoped, tag = 'scoped memory for tpu_custom_call.1']
    #allocation5 [shape = 'u8[8192]{0}', space=vmem, size = 0x2000, scoped, tag = 'output window, operand 0, single buffered']
    %6 = vsyncpa [#allocation3], 0
    %7 = vsyncpa [#allocation4], 0
    // Predicated region
    $region2: #{tpu_custom_call.1} parent=1 // pred_check
      _
    $region3: #{tpu_custom_call.1} parent=1 // pred_check_branch
      %9 = sbr.rel (0) target = $region5
    $region4: #{tpu_custom_call.1} parent=1 // pred_region
      %s11 = ssub.s32 256, 256
      %12 = vsyncadd [#allocation3], %s11
      %s14 = sshll.u32 [#allocation2], 4
      %s15 = int_to_ptr.vmem [resolvable:$true] %s14
      %17 = dma.hbm_to_vmem [thread:$0]  %s0, 256, %s15, [#allocation3]
    $region5: #{tpu_custom_call.1} parent=1 // pred_fallthru
      _
    // Predicated region
    $region6: #{tpu_custom_call.1} parent=1 // pred_check
      _
    $region7: #{tpu_custom_call.1} parent=1 // pred_check_branch
      %19 = sbr.rel (0) target = $region9
    $region8: #{tpu_custom_call.1} parent=1 // pred_region
      %20 = dma.done [#allocation3], 256
    $region9: #{tpu_custom_call.1} parent=1 // pred_fallthru
      _
    %v21 = vld [vmem:[#allocation2] sm:$0xff]
    %v22 = vld [vmem:[#allocation2 + $0x8] sm:$0xff]
    %v23 = vmul.f32 %v21, 2.0
    %v24 = vmul.f32 %v22, 2.0
    %v25 = vsub.f32 %v23, 1.0
    %v26 = vsub.f32 %v24, 1.0
    %27 = vst [vmem:[#allocation5] sm:$0xff] %v25
    %28 = vst [vmem:[#allocation5 + $0x8] sm:$0xff] %v26
    // Predicated region
    $region10: #{tpu_custom_call.1} parent=1 // pred_check
      _
    $region11: #{tpu_custom_call.1} parent=1 // pred_check_branch
      %30 = sbr.rel (0) target = $region13
    $region12: #{tpu_custom_call.1} parent=1 // pred_region
      %s32 = ssub.s32 256, 256
      %33 = vsyncadd [#allocation4], %s32
      %s35 = sshll.u32 [#allocation5], 4
      %s36 = int_to_ptr.vmem [resolvable:$true] %s35
      %38 = dma.vmem_to_hbm [thread:$0]  %s36, 256, %s1, [#allocation4]
    $region13: #{tpu_custom_call.1} parent=1 // pred_fallthru
      _
    // Predicated region
    $region14: #{tpu_custom_call.1} parent=1 // pred_check
      _
    $region15: #{tpu_custom_call.1} parent=1 // pred_check_branch
      %40 = sbr.rel (0) target = $region17
    $region16: #{tpu_custom_call.1} parent=1 // pred_region
      %41 = dma.done [#allocation4], 256
    $region17: #{tpu_custom_call.1} parent=1 // pred_fallthru
      _
    %42 = vsyncpa [#allocation3], 1
    %43 = vsyncpa [#allocation4], 1

</llo_original>
